<compile_context>
chip_gen: v7x
topology: tpu7x:2x2x1
jax: 0.10.0
libtpu: 0.0.40
codegen_flags: <defaults>
</compile_context>

<pallas_src>
import functools

import jax
import jax.numpy as jnp
from jax.experimental import pallas as pl
from jax.experimental.pallas import tpu as pltpu

LABEL_SIZE = 6
TARGET_SIZE = 4
MATRIX_SIZE = 2
NUM_LOGITS = 2
FUSED_ROWS = LABEL_SIZE + NUM_LOGITS          # 6 count rows + 2 logit rows = 8
EPS = 1e-8                                    # matches self.eps / PoissonNLLLoss eps

DESIRED_TILE_N = 131072                       # samples per grid step (8*4B*128K = 4 MiB)
MIN_TILE_N = 1024                             # 8 sublanes * 128 lanes


def _round_up(x, m):
    return ((x + m - 1) // m) * m


def _choose_tile_n(n):
    """Large tile for HBM roofline, but >=2 tiles when possible (v7x dual-TC)."""
    half = _round_up(max(1, (n + 1) // 2), MIN_TILE_N)
    return max(MIN_TILE_N, min(DESIRED_TILE_N, half))


def _zip_loss_kernel(params_ref, data_ref, out_ref, *,
                     n_actual, tile_n, tile_lanes, num_tiles):
    # params_ref (SMEM, (6,)):
    #   [total_count, sigmoid(target_ip), sigmoid(matrix_ip),
    #    log(1-p_t+eps), log(1-p_m+eps), log(total_count)]
    total_count = params_ref[0]
    p_t = params_ref[1]
    p_m = params_ref[2]
    log1mp_t = params_ref[3]
    log1mp_m = params_ref[4]
    log_tc = params_ref[5]

    # data_ref: (8 rows, 8 sublane-groups, tile_lanes) f32
    #   rows 0..3 = target counts, rows 4..5 = matrix counts,
    #   row 6 = target logit, row 7 = matrix logit.
    # Per-sample tensors below are (8, tile_lanes): fully occupied vregs.
    yp_t = data_ref[LABEL_SIZE, :, :]
    yp_m = data_ref[LABEL_SIZE + 1, :, :]

    s_tm = yp_t + yp_m
    lam_t = total_count * jnp.exp(s_tm)            # (8, L)
    lam_m = total_count * jnp.exp(yp_m)            # (8, L)
    # log(lam + eps) ~= log(total_count) + logits; differs only when lam <~ eps
    # (extremely negative logits), well inside the validation tolerance.
    log_lam_t = log_tc + s_tm
    log_lam_m = log_tc + yp_m

    def branch_row_sum(counts, lam, log_lam, p, log1mp, n_rows):
        # counts: (n_rows, 8, L) true counts; per-sample tensors: (8, L).
        zero_nll = -jnp.log(p + (1.0 - p) * jnp.exp(-lam) + EPS)   # (8, L)
        nz_const = lam - log1mp                                    # (8, L)
        z = (counts == 0.0).astype(jnp.float32)                    # (R, 8, L)
        n_zero = jnp.sum(z, axis=0)                                # (8, L)
        c_sum = jnp.sum(counts, axis=0)                            # (8, L)
        # sum over R rows of:  z*zero_nll + (1-z)*(nz_const - c*log_lam)
        # (c*log_lam vanishes where c == 0, so the plain count sum is exact)
        return (n_zero * zero_nll
                + (float(n_rows) - n_zero) * nz_const
                - log_lam * c_sum)                                 # (8, L)

    row_t = branch_row_sum(data_ref[0:TARGET_SIZE, :, :], lam_t, log_lam_t,
                           p_t, log1mp_t, TARGET_SIZE)
    row_m = branch_row_sum(data_ref[TARGET_SIZE:LABEL_SIZE, :, :], lam_m,
                           log_lam_m, p_m, log1mp_m, MATRIX_SIZE)

    # Global means: denominators are static (N*4, N*2), baked in as constants.
    inv_dt = 1.0 / float(n_actual * TARGET_SIZE)
    inv_dm = 1.0 / float(n_actual * MATRIX_SIZE)
    per_sample = row_t * inv_dt + row_m * inv_dm                   # (8, L)

    n_lane_blocks = tile_lanes // 128

    def lane_partial(x):
        # Two-level reduction: fold lane blocks into one (8, 128) vreg with
        # plain VPU adds (no cross-lane XLU reduce, better f32 accuracy).
        acc = x[:, 0:128]
        for b in range(1, n_lane_blocks):
            acc = acc + x[:, b * 128:(b + 1) * 128]
        return acc

    n_rem = n_actual - (num_tiles - 1) * tile_n    # static: samples in last tile

    def masked_partial():
        # Padding is not neutral for this loss: mask lanes past the real N.
        sub = jax.lax.broadcasted_iota(jnp.int32, (8, tile_lanes), 0)
        lane = jax.lax.broadcasted_iota(jnp.int32, (8, tile_lanes), 1)
        valid = (sub * tile_lanes + lane) < n_rem
        return lane_partial(jnp.where(valid, per_sample, 0.0))

    if n_rem == tile_n:
        # No padded samples anywhere: unmasked fast path on every tile.
        out_ref[...] = lane_partial(per_sample)
    elif num_tiles == 1:
        out_ref[...] = masked_partial()
    else:
        @pl.when(pl.program_id(0) != num_tiles - 1)
        def _():
            out_ref[...] = lane_partial(per_sample)

        @pl.when(pl.program_id(0) == num_tiles - 1)
        def _():
            out_ref[...] = masked_partial()


def zip_loss_pallas(y_true, y_pred, total_count, target_inflat_prob,
                    matrix_inflat_prob):
    """Pallas implementation of ZIPLoss.forward."""
    y_true = jnp.asarray(y_true, jnp.float32).reshape(-1, LABEL_SIZE)
    y_pred = jnp.asarray(y_pred, jnp.float32).reshape(-1, NUM_LOGITS)
    n = y_true.shape[0]

    tile_n = _choose_tile_n(n)
    tile_lanes = tile_n // 8
    num_tiles = (n + tile_n - 1) // tile_n
    n_pad = num_tiles * tile_n

    # Fused 8-row lane-major layout: rows 0..5 = counts, 6..7 = logits, sample
    # axis split as (num_tiles*8 sublane-groups, tile_lanes).
    # TODO(synk): ideally the producer emits this layout directly; this fused
    # concat+pad+transpose is one extra HBM round-trip for a mem-bound op.
    fused = jnp.concatenate([y_true, y_pred], axis=1)             # (n, 8)
    fused = jnp.pad(fused, ((0, n_pad - n), (0, 0)))              # (n_pad, 8)
    fused = fused.T.reshape(FUSED_ROWS, num_tiles * 8, tile_lanes)

    # Scalar terms hoisted out of the kernel (stable sigmoid for free).
    total_count = jnp.asarray(total_count, jnp.float32)
    p_t = jax.nn.sigmoid(jnp.asarray(target_inflat_prob, jnp.float32))
    p_m = jax.nn.sigmoid(jnp.asarray(matrix_inflat_prob, jnp.float32))
    params = jnp.stack([
        total_count,
        p_t,
        p_m,
        jnp.log(1.0 - p_t + EPS),
        jnp.log(1.0 - p_m + EPS),
        jnp.log(total_count),
    ]).astype(jnp.float32)

    kernel = functools.partial(_zip_loss_kernel, n_actual=n, tile_n=tile_n,
                               tile_lanes=tile_lanes, num_tiles=num_tiles)

    partials = pl.pallas_call(
        kernel,
        out_shape=jax.ShapeDtypeStruct((num_tiles * 8, 128), jnp.float32),
        grid=(num_tiles,),
        in_specs=[
            pl.BlockSpec(memory_space=pltpu.MemorySpace.SMEM),          # params
            pl.BlockSpec((FUSED_ROWS, 8, tile_lanes), lambda i: (0, i, 0)),
        ],
        out_specs=pl.BlockSpec((8, 128), lambda i: (i, 0)),
        compiler_params=pltpu.CompilerParams(
            dimension_semantics=("parallel",),   # independent tiles -> 2 TCs on v7x
            vmem_limit_bytes=32 * 1024 * 1024,   # headroom on v5e, within v7x physical
        ),
    )(params, fused)

    # Tiny final reduce over per-tile (8, 128) lane-dense partials.
    return jnp.sum(partials)


def zip_loss_ref(y_true, y_pred, total_count, target_ip, matrix_ip):
    """Pure-JAX reference mirroring the PyTorch module (for validation)."""
    y_true = jnp.asarray(y_true, jnp.float32).reshape(-1, LABEL_SIZE)
    y_pred = jnp.asarray(y_pred, jnp.float32)
    yt_t, yt_m = y_true[:, :TARGET_SIZE], y_true[:, TARGET_SIZE:]
    yp_t, yp_m = y_pred[:, 0], y_pred[:, 1]
    t_lam = (total_count * jnp.exp(yp_m + yp_t))[:, None] * jnp.ones((1, TARGET_SIZE))
    m_lam = (total_count * jnp.exp(yp_m))[:, None] * jnp.ones((1, MATRIX_SIZE))

    def zip_nll(lam, count, logit):
        p = jax.nn.sigmoid(logit)
        zero_nll = -jnp.log(p + (1 - p) * jnp.exp(-lam) + EPS)
        non_zero_nll = (lam - count * jnp.log(lam + EPS)) - jnp.log(1 - p + EPS)
        z = (count == 0).astype(jnp.float32)
        return jnp.mean(z * zero_nll + (1 - z) * non_zero_nll)

    return zip_nll(t_lam, yt_t, target_ip) + zip_nll(m_lam, yt_m, matrix_ip)


def _check(n, key):
    k1, k2 = jax.random.split(key)
    y_true = jax.random.poisson(k1, lam=1.0, shape=(n, LABEL_SIZE)).astype(jnp.float32)
    y_pred = 0.5 * jax.random.normal(k2, (n, NUM_LOGITS), dtype=jnp.float32)

    total_count = 1.0          # ZIPLoss.__init__ parameter init
    target_inflat_prob = 0.0
    matrix_inflat_prob = 0.0

    loss = zip_loss_pallas(y_true, y_pred, total_count,
                           target_inflat_prob, matrix_inflat_prob)
    loss = jax.block_until_ready(loss)
    ref = zip_loss_ref(y_true, y_pred, total_count,
                       target_inflat_prob, matrix_inflat_prob)
    if not jnp.allclose(loss, ref, rtol=1e-5, atol=1e-5):
        raise AssertionError(f"mismatch (n={n}): pallas={loss} ref={ref}")


if __name__ == "__main__":
    key = jax.random.PRNGKey(0)
    k_small, k_multi, k_exact = jax.random.split(key, 3)

    # Small shape consistent with the module (N samples of 6 labels, 2 logits),
    # single tile + padded-lane masking.
    _check(8, k_small)
    # Multi-tile + masked last tile (N not a multiple of the tile).
    _check(1500, k_multi)
    # Multi-tile, exact tile multiple -> unmasked fast path on every tile.
    _check(2048, k_exact)

    print("KERNEL_OK")
</pallas_src>

<mosaic_0001>
module attributes {stable_mosaic.version = 11 : i64} {
  func.func @_zip_loss_kernel(%arg0: i32, %arg1: memref<6xf32, #tpu.memory_space<smem>>, %arg2: memref<8x8x128xf32, #tpu.memory_space<vmem>>, %arg3: memref<8x128xf32, #tpu.memory_space<vmem>>) attributes {dimension_semantics = [#tpu.dimension_semantics<parallel>], iteration_bounds = array<i64: 1>, scalar_prefetch = 0 : i64, scratch_operands = 0 : i64, tpu.core_type = #tpu.core_type<tc>, window_params = [{transform_indices = @transform_0, window_bounds = array<i64: 6>}, {transform_indices = @transform_1, window_bounds = array<i64: 8, 8, 128>}, {transform_indices = @transform_2, window_bounds = array<i64: 8, 128>}]} {
    %c0 = arith.constant 0 : index
    %0 = memref.load %arg1[%c0] : memref<6xf32, #tpu.memory_space<smem>>
    %c1 = arith.constant 1 : index
    %1 = memref.load %arg1[%c1] : memref<6xf32, #tpu.memory_space<smem>>
    %c2 = arith.constant 2 : index
    %2 = memref.load %arg1[%c2] : memref<6xf32, #tpu.memory_space<smem>>
    %c3 = arith.constant 3 : index
    %3 = memref.load %arg1[%c3] : memref<6xf32, #tpu.memory_space<smem>>
    %c4 = arith.constant 4 : index
    %4 = memref.load %arg1[%c4] : memref<6xf32, #tpu.memory_space<smem>>
    %c5 = arith.constant 5 : index
    %5 = memref.load %arg1[%c5] : memref<6xf32, #tpu.memory_space<smem>>
    %c6 = arith.constant 6 : index
    %c0_0 = arith.constant 0 : index
    %c0_1 = arith.constant 0 : index
    %6 = vector.load %arg2[%c6, %c0_0, %c0_1] : memref<8x8x128xf32, #tpu.memory_space<vmem>>, vector<1x8x128xf32>
    %7 = vector.shape_cast %6 : vector<1x8x128xf32> to vector<8x128xf32>
    %c7 = arith.constant 7 : index
    %c0_2 = arith.constant 0 : index
    %c0_3 = arith.constant 0 : index
    %8 = vector.load %arg2[%c7, %c0_2, %c0_3] : memref<8x8x128xf32, #tpu.memory_space<vmem>>, vector<1x8x128xf32>
    %9 = vector.shape_cast %8 : vector<1x8x128xf32> to vector<8x128xf32>
    %10 = arith.addf %7, %9 : vector<8x128xf32>
    %11 = math.exp %10 : vector<8x128xf32>
    %12 = vector.broadcast %0 : f32 to vector<8x128xf32>
    %13 = arith.mulf %12, %11 : vector<8x128xf32>
    %14 = math.exp %9 : vector<8x128xf32>
    %15 = vector.broadcast %0 : f32 to vector<8x128xf32>
    %16 = arith.mulf %15, %14 : vector<8x128xf32>
    %17 = vector.broadcast %5 : f32 to vector<8x128xf32>
    %18 = arith.addf %17, %10 : vector<8x128xf32>
    %19 = vector.broadcast %5 : f32 to vector<8x128xf32>
    %20 = arith.addf %19, %9 : vector<8x128xf32>
    %c0_4 = arith.constant 0 : index
    %c0_5 = arith.constant 0 : index
    %c0_6 = arith.constant 0 : index
    %21 = vector.load %arg2[%c0_4, %c0_5, %c0_6] : memref<8x8x128xf32, #tpu.memory_space<vmem>>, vector<4x8x128xf32>
    %cst = arith.constant 1.000000e+00 : f32
    %22 = arith.subf %cst, %1 : f32
    %cst_7 = arith.constant 0.000000e+00 : f32
    %23 = vector.broadcast %cst_7 : f32 to vector<8x128xf32>
    %24 = arith.subf %23, %13 : vector<8x128xf32>
    %25 = math.exp %24 : vector<8x128xf32>
    %26 = vector.broadcast %22 : f32 to vector<8x128xf32>
    %27 = arith.mulf %26, %25 : vector<8x128xf32>
    %28 = vector.broadcast %1 : f32 to vector<8x128xf32>
    %29 = arith.addf %28, %27 : vector<8x128xf32>
    %cst_8 = arith.constant 9.99999993E-9 : f32
    %30 = vector.broadcast %cst_8 : f32 to vector<8x128xf32>
    %31 = arith.addf %29, %30 : vector<8x128xf32>
    %32 = math.log %31 : vector<8x128xf32>
    %cst_9 = arith.constant 0.000000e+00 : f32
    %33 = vector.broadcast %cst_9 : f32 to vector<8x128xf32>
    %34 = arith.subf %33, %32 : vector<8x128xf32>
    %35 = vector.broadcast %3 : f32 to vector<8x128xf32>
    %36 = arith.subf %13, %35 : vector<8x128xf32>
    %cst_10 = arith.constant 0.000000e+00 : f32
    %37 = vector.broadcast %cst_10 : f32 to vector<4x8x128xf32>
    %38 = arith.cmpf oeq, %21, %37 : vector<4x8x128xf32>
    %39 = arith.extui %38 : vector<4x8x128xi1> to vector<4x8x128xi32>
    %40 = arith.sitofp %39 : vector<4x8x128xi32> to vector<4x8x128xf32>
    %cst_11 = arith.constant dense<0.000000e+00> : vector<8x128xf32>
    %41 = vector.multi_reduction <add>, %40, %cst_11 [0] : vector<4x8x128xf32> to vector<8x128xf32>
    %cst_12 = arith.constant dense<0.000000e+00> : vector<8x128xf32>
    %42 = vector.multi_reduction <add>, %21, %cst_12 [0] : vector<4x8x128xf32> to vector<8x128xf32>
    %43 = arith.mulf %41, %34 : vector<8x128xf32>
    %cst_13 = arith.constant 4.000000e+00 : f32
    %44 = vector.broadcast %cst_13 : f32 to vector<8x128xf32>
    %45 = arith.subf %44, %41 : vector<8x128xf32>
    %46 = arith.mulf %45, %36 : vector<8x128xf32>
    %47 = arith.addf %43, %46 : vector<8x128xf32>
    %48 = arith.mulf %18, %42 : vector<8x128xf32>
    %49 = arith.subf %47, %48 : vector<8x128xf32>
    %c4_14 = arith.constant 4 : index
    %c0_15 = arith.constant 0 : index
    %c0_16 = arith.constant 0 : index
    %50 = vector.load %arg2[%c4_14, %c0_15, %c0_16] : memref<8x8x128xf32, #tpu.memory_space<vmem>>, vector<2x8x128xf32>
    %cst_17 = arith.constant 1.000000e+00 : f32
    %51 = arith.subf %cst_17, %2 : f32
    %cst_18 = arith.constant 0.000000e+00 : f32
    %52 = vector.broadcast %cst_18 : f32 to vector<8x128xf32>
    %53 = arith.subf %52, %16 : vector<8x128xf32>
    %54 = math.exp %53 : vector<8x128xf32>
    %55 = vector.broadcast %51 : f32 to vector<8x128xf32>
    %56 = arith.mulf %55, %54 : vector<8x128xf32>
    %57 = vector.broadcast %2 : f32 to vector<8x128xf32>
    %58 = arith.addf %57, %56 : vector<8x128xf32>
    %cst_19 = arith.constant 9.99999993E-9 : f32
    %59 = vector.broadcast %cst_19 : f32 to vector<8x128xf32>
    %60 = arith.addf %58, %59 : vector<8x128xf32>
    %61 = math.log %60 : vector<8x128xf32>
    %cst_20 = arith.constant 0.000000e+00 : f32
    %62 = vector.broadcast %cst_20 : f32 to vector<8x128xf32>
    %63 = arith.subf %62, %61 : vector<8x128xf32>
    %64 = vector.broadcast %4 : f32 to vector<8x128xf32>
    %65 = arith.subf %16, %64 : vector<8x128xf32>
    %cst_21 = arith.constant 0.000000e+00 : f32
    %66 = vector.broadcast %cst_21 : f32 to vector<2x8x128xf32>
    %67 = arith.cmpf oeq, %50, %66 : vector<2x8x128xf32>
    %68 = arith.extui %67 : vector<2x8x128xi1> to vector<2x8x128xi32>
    %69 = arith.sitofp %68 : vector<2x8x128xi32> to vector<2x8x128xf32>
    %cst_22 = arith.constant dense<0.000000e+00> : vector<8x128xf32>
    %70 = vector.multi_reduction <add>, %69, %cst_22 [0] : vector<2x8x128xf32> to vector<8x128xf32>
    %cst_23 = arith.constant dense<0.000000e+00> : vector<8x128xf32>
    %71 = vector.multi_reduction <add>, %50, %cst_23 [0] : vector<2x8x128xf32> to vector<8x128xf32>
    %72 = arith.mulf %70, %63 : vector<8x128xf32>
    %cst_24 = arith.constant 2.000000e+00 : f32
    %73 = vector.broadcast %cst_24 : f32 to vector<8x128xf32>
    %74 = arith.subf %73, %70 : vector<8x128xf32>
    %75 = arith.mulf %74, %65 : vector<8x128xf32>
    %76 = arith.addf %72, %75 : vector<8x128xf32>
    %77 = arith.mulf %20, %71 : vector<8x128xf32>
    %78 = arith.subf %76, %77 : vector<8x128xf32>
    %cst_25 = arith.constant 3.125000e-02 : f32
    %79 = vector.broadcast %cst_25 : f32 to vector<8x128xf32>
    %80 = arith.mulf %49, %79 : vector<8x128xf32>
    %cst_26 = arith.constant 6.250000e-02 : f32
    %81 = vector.broadcast %cst_26 : f32 to vector<8x128xf32>
    %82 = arith.mulf %78, %81 : vector<8x128xf32>
    %83 = arith.addf %80, %82 : vector<8x128xf32>
    %84 = tpu.iota {dimensions = array<i32: 0>} : vector<8x128xi32>
    %85 = tpu.iota {dimensions = array<i32: 1>} : vector<8x128xi32>
    %c128_i32 = arith.constant 128 : i32
    %86 = vector.broadcast %c128_i32 : i32 to vector<8x128xi32>
    %87 = arith.muli %84, %86 : vector<8x128xi32>
    %88 = arith.addi %87, %85 : vector<8x128xi32>
    %c8_i32 = arith.constant 8 : i32
    %89 = vector.broadcast %c8_i32 : i32 to vector<8x128xi32>
    %90 = arith.cmpi slt, %88, %89 : vector<8x128xi32>
    %cst_27 = arith.constant 0.000000e+00 : f32
    %91 = vector.broadcast %cst_27 : f32 to vector<8x128xf32>
    %92 = arith.select %90, %83, %91 : vector<8x128xi1>, vector<8x128xf32>
    %c0_28 = arith.constant 0 : index
    %c0_29 = arith.constant 0 : index
    %93 = vector.load %arg3[%c0_28, %c0_29] : memref<8x128xf32, #tpu.memory_space<vmem>>, vector<8x128xf32>
    tpu.vector_store %arg3[%c0_28, %c0_29], %92 {strides = array<i32>} : memref<8x128xf32, #tpu.memory_space<vmem>>, vector<8x128xf32>,
    return
  }
  func.func @transform_0(%arg0: i32) -> i32 {
    %c0_i32 = arith.constant 0 : i32
    %c0_i32_0 = arith.constant 0 : i32
    return %c0_i32 : i32
  }
  func.func @transform_1(%arg0: i32) -> (i32, i32, i32) {
    %c0_i32 = arith.constant 0 : i32
    %c0_i32_0 = arith.constant 0 : i32
    %c0_i32_1 = arith.constant 0 : i32
    return %c0_i32, %arg0, %c0_i32_0 : i32, i32, i32
  }
  func.func @transform_2(%arg0: i32) -> (i32, i32) {
    %c0_i32 = arith.constant 0 : i32
    %c0_i32_0 = arith.constant 0 : i32
    return %arg0, %c0_i32 : i32, i32
  }
}

</mosaic_0001>

<llo_original>
// kernel: tpu_custom_call.1
$region0: #{tpu_custom_call.1}
  #allocation0 [shape = 'u32[]', space=smem, size = 0x4, offset = 0x4, fixed_abs, tag = 'smem constant byte address 0x4 - core index']
  #allocation1 [shape = 'u32[144,128]{1,0:T(1,128)}', space=vmem, size = 0x12000, scoped, tag = 'internal scratch']
  %s0 = inlined_call_operand.hbm [shape: f32[6], index: 0, kind: input, shape index: {}]
  %s1 = inlined_call_operand.hbm [shape: f32[8,8,128], index: 1, kind: input, shape index: {}]
  %s2 = inlined_call_operand.hbm [shape: f32[8,128], index: 2, kind: output, shape index: {}]
  %s3 = sld [smem:[#allocation0]]
  $region26: #{tpu_custom_call.1} parent=0
    _
  %s5 = ssub.s32 1, %s3
  %s6 = scalar_select 0, %s5, %s3
  $region1: #{tpu_custom_call.1} parent=0
    #allocation2 [shape = 'u8[512]{0}', space=smem, size = 0x200, scoped, tag = 'input window, operand 0, single buffered']
    #allocation3 [shape = 's32[1]{0}', space=sflag, size = 0x4, scoped, tag = 'scoped memory for tpu_custom_call.1']
    #allocation4 [shape = 's32[1]{0}', space=sflag, size = 0x4, scoped, tag = 'scoped memory for tpu_custom_call.1']
    #allocation5 [shape = 's32[1]{0}', space=sflag, size = 0x4, scoped, tag = 'scoped memory for tpu_custom_call.1']
    #allocation6 [shape = 'u8[32768]{0}', space=vmem, size = 0x8000, scoped, tag = 'input window, operand 1, single buffered']
    #allocation7 [shape = 'u8[4096]{0}', space=vmem, size = 0x1000, scoped, tag = 'output window, operand 0, single buffered']
    %7 = vsyncpa [#allocation5], 0
    %8 = vsyncpa [#allocation3], 0
    %9 = vsyncpa [#allocation4], 0
    // Predicated region
    $region2: #{tpu_custom_call.1} parent=1 // pred_check
      _
    $region3: #{tpu_custom_call.1} parent=1 // pred_check_branch
      %11 = sbr.rel (0) target = $region5
    $region4: #{tpu_custom_call.1} parent=1 // pred_region
      %s13 = ssub.s32 16, 16
      %14 = vsyncadd [#allocation5], %s13
      %17 = dma.hbm_to_smem %s0, 16, [#allocation2], [#allocation5]
    $region5: #{tpu_custom_call.1} parent=1 // pred_fallthru
      _
    // Predicated region
    $region6: #{tpu_custom_call.1} parent=1 // pred_check
      _
    $region7: #{tpu_custom_call.1} parent=1 // pred_check_branch
      %19 = sbr.rel (0) target = $region9
    $region8: #{tpu_custom_call.1} parent=1 // pred_region
      %s21 = ssub.s32 1024, 1024
      %22 = vsyncadd [#allocation3], %s21
      %s23 = sshll.u32 [#allocation6], 4
      %s24 = int_to_ptr.vmem [resolvable:$true] %s23
      %29 = dma.hbm_to_vmem [thread:$0]  %s1, 1024, %s24, [#allocation3], 128, 128, 8
    $region9: #{tpu_custom_call.1} parent=1 // pred_fallthru
      _
    // Predicated region
    $region10: #{tpu_custom_call.1} parent=1 // pred_check
      _
    $region11: #{tpu_custom_call.1} parent=1 // pred_check_branch
      %31 = sbr.rel (0) target = $region13
    $region12: #{tpu_custom_call.1} parent=1 // pred_region
      %32 = dma.done [#allocation5], 16
    $region13: #{tpu_custom_call.1} parent=1 // pred_fallthru
      _
    // Predicated region
    $region14: #{tpu_custom_call.1} parent=1 // pred_check
      _
    $region15: #{tpu_custom_call.1} parent=1 // pred_check_branch
      %34 = sbr.rel (0) target = $region17
    $region16: #{tpu_custom_call.1} parent=1 // pred_region
      %35 = dma.done [#allocation3], 1024
    $region17: #{tpu_custom_call.1} parent=1 // pred_fallthru
      _
    %36 = sfence
    %s37 = sld [smem:[#allocation2]]
    %s38 = sld [smem:[#allocation2 + $0x1]]
    %s39 = sld [smem:[#allocation2 + $0x2]]
    %s40 = sld [smem:[#allocation2 + $0x3]]
    %s41 = sld [smem:[#allocation2 + $0x4]]
    %s42 = sld [smem:[#allocation2 + $0x5]]
    %s43 = scalar_lea.vmem [#allocation6], 48
    %v44 = vld [vmem:[%s43] sm:$0xff]
    %s45 = scalar_lea.vmem [#allocation6], 56
    %v46 = vld [vmem:[%s45] sm:$0xff]
    %v47 = vadd.f32 %v44, %v46
    %v48 = vmul.f32 %v47, 1.442695
    %v49 = vpow.pop %v48
    %v50 = vstv %s37
    %v51 = vmul.f32 %v50, %v49
    %v52 = vmul.f32 %v46, 1.442695
    %v53 = vpow.pop %v52
    %v54 = vmul.f32 %v50, %v53
    %v55 = vstv %s42
    %v56 = vadd.f32 %v55, %v47
    %v57 = vadd.f32 %v55, %v46
    %v58 = vld [vmem:[#allocation6] sm:$0xff]
    %v59 = vld [vmem:[#allocation6 + $0x8] sm:$0xff]
    %v60 = vld [vmem:[#allocation6 + $0x10] sm:$0xff]
    %v61 = vld [vmem:[#allocation6 + $0x18] sm:$0xff]
    %s62 = ssub.f32 1.0, %s38
    %v63 = vsub.f32 0.0, %v51
    %v64 = vmul.f32 %v63, 1.442695
    %v65 = vpow.pop %v64
    %v66 = vstv %s62
    %v67 = vmul.f32 %v66, %v65
    %v68 = vstv %s38
    %v69 = vadd.f32 %v68, %v67
    %v70 = vadd.f32 %v69, 1e-08
    %v71 = vlog2.pop %v70
    %v72 = vmul.f32 %v71, 0.6931472
    %v73 = vsub.f32 0.0, %v72
    %v74 = vstv %s40
    %v75 = vsub.f32 %v51, %v74
    %vm76 = vcmp.eq.f32.partialorder %v58, 0.0
    %vm77 = vcmp.eq.f32.partialorder %v59, 0.0
    %vm78 = vcmp.eq.f32.partialorder %v60, 0.0
    %vm79 = vcmp.eq.f32.partialorder %v61, 0.0
    %v80 = vsel %vm76, 1, 0
    %v81 = vsel %vm77, 1, 0
    %v82 = vsel %vm78, 1, 0
    %v83 = vsel %vm79, 1, 0
    %v84 = vcvt.s32.f32 %v80
    %v85 = vcvt.s32.f32 %v81
    %v86 = vcvt.s32.f32 %v82
    %v87 = vcvt.s32.f32 %v83
    %v88 = vadd.f32 %v84, %v85
    %v89 = vadd.f32 %v88, %v86
    %v90 = vadd.f32 %v89, %v87
    %v91 = vadd.f32 %v58, %v59
    %v92 = vadd.f32 %v91, %v60
    %v93 = vadd.f32 %v92, %v61
    %v94 = vmul.f32 %v90, %v73
    %v95 = vsub.f32 4.0, %v90
    %v96 = vmul.f32 %v95, %v75
    %v97 = vadd.f32 %v94, %v96
    %v98 = vmul.f32 %v56, %v93
    %v99 = vsub.f32 %v97, %v98
    %s100 = scalar_lea.vmem [#allocation6], 32
    %v101 = vld [vmem:[%s100] sm:$0xff]
    %v102 = vld [vmem:[%s100 + $0x8] sm:$0xff]
    %s103 = ssub.f32 1.0, %s39
    %v104 = vsub.f32 0.0, %v54
    %v105 = vmul.f32 %v104, 1.442695
    %v106 = vpow.pop %v105
    %v107 = vstv %s103
    %v108 = vmul.f32 %v107, %v106
    %v109 = vstv %s39
    %v110 = vadd.f32 %v109, %v108
    %v111 = vadd.f32 %v110, 1e-08
    %v112 = vlog2.pop %v111
    %v113 = vmul.f32 %v112, 0.6931472
    %v114 = vsub.f32 0.0, %v113
    %v115 = vstv %s41
    %v116 = vsub.f32 %v54, %v115
    %vm117 = vcmp.eq.f32.partialorder %v101, 0.0
    %vm118 = vcmp.eq.f32.partialorder %v102, 0.0
    %v119 = vsel %vm117, 1, 0
    %v120 = vsel %vm118, 1, 0
    %v121 = vcvt.s32.f32 %v119
    %v122 = vcvt.s32.f32 %v120
    %v123 = vadd.f32 %v121, %v122
    %v124 = vadd.f32 %v101, %v102
    %v125 = vmul.f32 %v123, %v114
    %v126 = vsub.f32 2.0, %v123
    %v127 = vmul.f32 %v126, %v116
    %v128 = vadd.f32 %v125, %v127
    %v129 = vmul.f32 %v57, %v124
    %v130 = vsub.f32 %v128, %v129
    %v131 = vmul.f32 %v99, 0.03125
    %v132 = vmul.f32 %v130, 0.0625
    %v133 = vadd.f32 %v131, %v132
    %v134 = vlaneseq
    %v135 = vshrl.u32 %v134, 7
    %v136 = vlaneseq
    %v137 = vand.u32 %v136, 127
    %v138 = vmul.u32 %v135, 128
    %v139 = vadd.s32 %v138, %v137
    %vm140 = vcmp.lt.s32.totalorder %v139, 8
    %v141 = vsel %vm140, %v133, 0.0
    %142 = vst [vmem:[#allocation7] sm:$0xff] %v141
    // Predicated region
    $region18: #{tpu_custom_call.1} parent=1 // pred_check
      _
    $region19: #{tpu_custom_call.1} parent=1 // pred_check_branch
      %144 = sbr.rel (0) target = $region21
    $region20: #{tpu_custom_call.1} parent=1 // pred_region
      %s146 = ssub.s32 128, 128
      %147 = vsyncadd [#allocation4], %s146
      %s149 = sshll.u32 [#allocation7], 4
      %s150 = int_to_ptr.vmem [resolvable:$true] %s149
      %152 = dma.vmem_to_hbm [thread:$0]  %s150, 128, %s2, [#allocation4]
    $region21: #{tpu_custom_call.1} parent=1 // pred_fallthru
      _
    // Predicated region
    $region22: #{tpu_custom_call.1} parent=1 // pred_check
      _
    $region23: #{tpu_custom_call.1} parent=1 // pred_check_branch
      %154 = sbr.rel (0) target = $region25
    $region24: #{tpu_custom_call.1} parent=1 // pred_region
      %155 = dma.done [#allocation4], 128
    $region25: #{tpu_custom_call.1} parent=1 // pred_fallthru
      _
    %156 = vsyncpa [#allocation3], 1
    %157 = vsyncpa [#allocation4], 1
    %158 = vsyncpa [#allocation5], 1

</llo_original>
